<compile_context>
chip_gen: v7x
topology: tpu7x:2x2x1
jax: 0.10.0
libtpu: 0.0.40
codegen_flags: <defaults>
</compile_context>

<pallas_src>
import jax
import jax.numpy as jnp
from jax.experimental import pallas as pl
from jax.experimental.pallas import tpu as pltpu


# ---------------------------------------------------------------------------
# Kernel
# ---------------------------------------------------------------------------
def getd_scores_kernel(r_ref, e_ref, g0_ref, gk_ref, gm_ref,
                       b0_ref, bk_ref, bw_ref, et_ref, logit_ref):
    """One lane-dense entity tile of  logits = bnw(contract(bnr(r), bne(e))) @ E^T.

    The rank-space contraction is tiny and recomputed per tile (hides under the
    E^T DMA).  BN scales are already folded into the core matrices; only the
    three bias rows remain as adds.
    """
    # T0[z, i*rm + j]   = sum_A bnr(r)[z,A] * G0[i, j, A]                 (MXU)
    t0 = jnp.dot(r_ref[...], g0_ref[...],
                 preferred_element_type=jnp.float32) + b0_ref[...]
    # M [z, i*rm + j]   = sum_P bne(e)[z,P] * Gknown_sum[i, P]            (MXU)
    m = jnp.dot(e_ref[...], gk_ref[...],
                preferred_element_type=jnp.float32) + bk_ref[...]
    # W [z, o] = bnw( sum_{i,j} T0[z,i,j] * M[z,i] * Gmiss_sum[j, o] )    (VPU + MXU)
    w = jnp.dot(t0 * m, gm_ref[...],
                preferred_element_type=jnp.float32) + bw_ref[...]
    # logits tile = W @ E^T[:, tile]   (bf16 feed to the MXU, f32 accumulate)
    logit_ref[...] = jnp.dot(w.astype(et_ref.dtype), et_ref[...],
                             preferred_element_type=jnp.float32
                             ).astype(logit_ref.dtype)


# ---------------------------------------------------------------------------
# Host-side helpers (gathers, BN folding, core pre-contraction, tiling)
# ---------------------------------------------------------------------------
def _round_up(x, m):
    return (x + m - 1) // m * m


def _bn_affine(d, params=None, eps=1e-5):
    """Fold PyTorch BatchNorm1d (eval mode) into per-feature scale / bias."""
    params = params or {}
    gamma = params.get('gamma', jnp.ones((d,), jnp.float32))
    beta = params.get('beta', jnp.zeros((d,), jnp.float32))
    mean = params.get('running_mean', jnp.zeros((d,), jnp.float32))
    var = params.get('running_var', jnp.ones((d,), jnp.float32))
    scale = gamma / jnp.sqrt(var + eps)
    bias = beta - mean * scale
    return scale, bias


def _fold_cores(cores, miss, bnr, bne, bnw):
    """Pre-contract the cores (batch-independent) and fold the BN affines.

      g0_s[A, i*rm + j] = bnr_scale[A] * G0[bond_known=i, bond_miss=j, A]
      gk_s[P, i*rm + j] = bne_scale[P] * sum_c G_known[i, c, P]
      gm_s[i*rm + j, o] = (sum_c G_miss[j, c, o]) * bnw_scale[o]
      b0 / bk / bw      = the corresponding bias rows.
    """
    G0, G1, G2 = cores      # (ra, rb, d_r), (ra, rc, d_e), (rb, rc, d_e)
    if miss == 2:           # known entity = mode 1 (bond a), predict mode 2 (bond b)
        g0 = jnp.transpose(G0, (2, 0, 1))        # (d_r, ra, rb)
        gk = jnp.sum(G1, axis=1)                 # (ra, d_e)
        gm = jnp.sum(G2, axis=1)                 # (rb, d_e)
    else:                   # miss == 1: known entity = mode 2 (bond b), predict mode 1
        g0 = jnp.transpose(G0, (2, 1, 0))        # (d_r, rb, ra)
        gk = jnp.sum(G2, axis=1)                 # (rb, d_e)
        gm = jnp.sum(G1, axis=1)                 # (ra, d_e)
    d_r, rk, rm = g0.shape
    g0_flat = g0.reshape(d_r, rk * rm)
    gk_rep = jnp.repeat(gk.T, rm, axis=1)        # (d_e, rk*rm): col i*rm+j = gk[i, :]
    gm_rep = jnp.tile(gm, (rk, 1))               # (rk*rm, d_e): row i*rm+j = gm[j, :]

    s_r, b_r = bnr
    s_e, b_e = bne
    s_w, b_w = bnw
    g0_s = g0_flat * s_r[:, None]
    gk_s = gk_rep * s_e[:, None]
    gm_s = gm_rep * s_w[None, :]
    b0 = (b_r @ g0_flat).reshape(1, -1)          # (1, rk*rm)
    bk = (b_e @ gk_rep).reshape(1, -1)           # (1, rk*rm)
    bw = b_w.reshape(1, -1)                      # (1, d_e)
    return g0_s, gk_s, gm_s, b0, bk, bw


def _choose_entity_tile(n_ent, d_e, max_b_pad, tile_n, et_bytes, out_bytes,
                        vmem_budget=12 * (1 << 20)):
    """Pick a lane-dense entity tile width.

    * start from the requested (large) tile_n, 128-aligned,
    * clamp so the double-buffered E^T + logits tiles fit `vmem_budget`
      (conservative under v5e's 16 MiB scoped-VMEM default; v6e/v7x have
      more headroom),
    * force >= 2 tiles when n_ent allows so the "parallel" grid axis can be
      split across the two TensorCores on v7x.
    """
    n_lane = _round_up(n_ent, 128)
    tn = min(_round_up(max(tile_n, 128), 128), n_lane)
    per_col = 2 * (d_e * et_bytes + max_b_pad * out_bytes)   # double-buffered bytes/column
    max_tn = max(128, (vmem_budget // per_col) // 128 * 128)
    tn = min(tn, max_tn)
    if tn >= n_lane and n_lane >= 256:
        tn = _round_up((n_lane + 1) // 2, 128)
    return tn


# ---------------------------------------------------------------------------
# Forward
# ---------------------------------------------------------------------------
def make_getd_fc_forward(E_w, R_w, cores, miss, *, tile_n=8192,
                         score_dtype=jnp.bfloat16, logits_dtype=jnp.float32,
                         bn_params=None, eps=1e-5, max_batch=256,
                         trim_output=True):
    """Build a cached forward fn for GETD_FC_opt (k = 3, eval mode).

    Everything batch-independent is prepared ONCE here: the folded core
    matrices (+BN) and the padded / transposed / cast entity table E^T, so the
    per-call path never re-reads the full embedding table.

    `bn_params` may supply real BatchNorm stats as
      {'bnr': {'gamma','beta','running_mean','running_var'}, 'bne': {...}, 'bnw': {...}}.
    Callers should batch r_idx toward 128-256 rows per call: the E^T stream is
    independent of B, so larger batches give near-linear scoring throughput.
    """
    n_ent, d_e = E_w.shape
    d_r = R_w.shape[1]
    assert miss in (1, 2) and len(cores) == 3

    bn_params = bn_params or {}
    bnr = _bn_affine(d_r, bn_params.get('bnr'), eps)
    bne = _bn_affine(d_e, bn_params.get('bne'), eps)
    bnw = _bn_affine(d_e, bn_params.get('bnw'), eps)
    g0_s, gk_s, gm_s, b0, bk, bw = _fold_cores(cores, miss, bnr, bne, bnw)
    rkm = g0_s.shape[1]

    et_bytes = jnp.dtype(score_dtype).itemsize
    out_bytes = jnp.dtype(logits_dtype).itemsize
    max_b_pad = max(8, _round_up(max_batch, 8))
    tn = _choose_entity_tile(n_ent, d_e, max_b_pad, tile_n, et_bytes, out_bytes)
    n_pad = _round_up(n_ent, tn)
    grid_n = n_pad // tn

    # Cached entity table: padded (unmasked lane-dense stores), transposed,
    # cast once (dominant HBM stream is halved with the default bf16).
    E_T = jnp.pad(E_w, ((0, n_pad - n_ent), (0, 0))).T.astype(score_dtype)

    def forward(r_idx, e_idx_list, W=None):
        assert len(e_idx_list) == 1, "k = 3 (one known entity mode) supported"
        B = r_idx.shape[0]
        B_pad = max(8, _round_up(B, 8))

        # Embedding lookups (glue).
        r_emb = R_w[r_idx]                           # (B, d_r)
        e_emb = E_w[e_idx_list[0]]                   # (B, d_e)
        if B_pad != B:
            r_emb = jnp.pad(r_emb, ((0, B_pad - B), (0, 0)))
            e_emb = jnp.pad(e_emb, ((0, B_pad - B), (0, 0)))

        logits_pad = pl.pallas_call(
            getd_scores_kernel,
            out_shape=jax.ShapeDtypeStruct((B_pad, n_pad), logits_dtype),
            grid=(grid_n,),
            in_specs=[
                # Small resident operands (same block every step -> no re-DMA).
                pl.BlockSpec((B_pad, d_r), lambda j: (0, 0)),
                pl.BlockSpec((B_pad, d_e), lambda j: (0, 0)),
                pl.BlockSpec((d_r, rkm), lambda j: (0, 0)),
                pl.BlockSpec((d_e, rkm), lambda j: (0, 0)),
                pl.BlockSpec((rkm, d_e), lambda j: (0, 0)),
                pl.BlockSpec((1, rkm), lambda j: (0, 0)),
                pl.BlockSpec((1, rkm), lambda j: (0, 0)),
                pl.BlockSpec((1, d_e), lambda j: (0, 0)),
                # Streamed, double-buffered E^T tile (HBM-bound phase).
                pl.BlockSpec((d_e, tn), lambda j: (0, j)),
            ],
            out_specs=pl.BlockSpec((B_pad, tn), lambda j: (0, j)),
            compiler_params=pltpu.CompilerParams(
                dimension_semantics=("parallel",)),   # shard entity tiles across TCs
        )(r_emb, e_emb, g0_s, gk_s, gm_s, b0, bk, bw, E_T)

        if trim_output:
            return logits_pad[:B, :n_ent], W
        # Padded logits (caller fuses the trim into the loss / top-k).
        return logits_pad, W

    return forward


def getd_fc_forward(r_idx, e_idx_list, miss, E_w, R_w, cores, W=None, **opts):
    """One-shot convenience wrapper (re-prepares E^T; prefer make_getd_fc_forward
    when calling repeatedly so the table prep is amortized)."""
    fwd = make_getd_fc_forward(E_w, R_w, cores, miss, **opts)
    return fwd(r_idx, e_idx_list, W)


# ---------------------------------------------------------------------------
# Pure-JAX reference (mirrors the module's cached einsum equations, eval mode)
# ---------------------------------------------------------------------------
def _reference_forward(r_idx, e_idx_list, miss, E_w, R_w, cores, eps=1e-5):
    s = 1.0 / jnp.sqrt(1.0 + eps)                # default BN running stats
    G0, G1, G2 = cores
    R0 = R_w[r_idx] * s
    T = jnp.einsum('zA,abA->zab', R0, G0)        # eq_fuse_rel
    idx_known = 0
    for m in (1, 2):
        if m == miss:
            continue
        Em = E_w[e_idx_list[idx_known]] * s
        if m == 1:
            T = jnp.einsum('zab,acB,zB->zab', T, G1, Em)   # eq_absorb[1]
        else:
            T = jnp.einsum('zab,bcC,zC->zab', T, G2, Em)   # eq_absorb[2]
        idx_known += 1
    if miss == 1:
        T = jnp.einsum('zab,acB->zabB', T, G1)   # eq_missing[1]
    else:
        T = jnp.einsum('zab,bcC->zabC', T, G2)   # eq_missing[2]
    S = T.sum(axis=(1, 2))                       # collapse bonds
    out = S * s                                  # bnw (eval); hidden_dropout identity
    return out @ E_w.T


def _rel_err(a, b):
    return float(jnp.max(jnp.abs(a - b)) / (jnp.max(jnp.abs(b)) + 1e-30))


if __name__ == "__main__":
    key = jax.random.PRNGKey(0)
    ks = jax.random.split(key, 8)

    # Small shapes consistent with the module (k = 3: relation + 2 entity modes).
    n_ent, n_rel = 40, 6
    d_e, d_r = 32, 24
    ra, rb, rc = 8, 4, 6              # bond ranks for edges (0,1), (0,2), (1,2)
    B = 8

    # Parameters (E.weight / R.weight ~ 0.001*N(0,1); cores ~ U(-0.1, 0.1)).
    E_w = 0.001 * jax.random.normal(ks[0], (n_ent, d_e), jnp.float32)
    R_w = 0.001 * jax.random.normal(ks[1], (n_rel, d_r), jnp.float32)
    G0 = jax.random.uniform(ks[2], (ra, rb, d_r), jnp.float32, -0.1, 0.1)
    G1 = jax.random.uniform(ks[3], (ra, rc, d_e), jnp.float32, -0.1, 0.1)
    G2 = jax.random.uniform(ks[4], (rb, rc, d_e), jnp.float32, -0.1, 0.1)
    cores = (G0, G1, G2)

    r_idx = jax.random.randint(ks[5], (B,), 0, n_rel)
    e_idx = [jax.random.randint(ks[6], (B,), 0, n_ent)]

    # f32 scoring path, both missing-entity domains (tight tolerance).
    for miss in (1, 2):
        fwd = make_getd_fc_forward(E_w, R_w, cores, miss,
                                   score_dtype=jnp.float32)
        logits, _ = fwd(r_idx, e_idx)
        logits = jax.block_until_ready(logits)
        ref = _reference_forward(r_idx, e_idx, miss, E_w, R_w, cores)
        assert logits.shape == (B, n_ent)
        err = _rel_err(logits, ref)
        assert err < 1e-3, f"f32 mismatch vs reference (miss={miss}, rel={err})"
        # Second call reuses the cached E^T / folded cores.
        logits_b, _ = fwd(r_idx, e_idx)
        jax.block_until_ready(logits_b)
        assert _rel_err(logits_b, ref) < 1e-3

    # Multi-tile grid paths on a larger table (n_ent = 300).
    n_ent2 = 300
    E_w2 = 0.001 * jax.random.normal(ks[7], (n_ent2, d_e), jnp.float32)
    ref2 = _reference_forward(r_idx, e_idx, 2, E_w2, R_w, cores)
    #  (a) explicit small tile -> 3 tiles of 128.
    logits2, _ = getd_fc_forward(r_idx, e_idx, 2, E_w2, R_w, cores,
                                 tile_n=128, score_dtype=jnp.float32)
    logits2 = jax.block_until_ready(logits2)
    assert logits2.shape == (B, n_ent2)
    err2 = _rel_err(logits2, ref2)
    assert err2 < 1e-3, f"f32 multi-tile mismatch vs reference (rel={err2})"
    #  (b) default large tile -> forced split into >= 2 tiles (v7x 2-TC path).
    logits3, _ = getd_fc_forward(r_idx, e_idx, 2, E_w2, R_w, cores,
                                 score_dtype=jnp.float32)
    logits3 = jax.block_until_ready(logits3)
    err3 = _rel_err(logits3, ref2)
    assert err3 < 1e-3, f"f32 2-tile-split mismatch vs reference (rel={err3})"

    # Default path: bf16 E^T streaming (dominant HBM stream halved) — looser
    # tolerance.  Downstream ranking metrics should be validated separately.
    logits_bf16, _ = getd_fc_forward(r_idx, e_idx, 2, E_w, R_w, cores)
    logits_bf16 = jax.block_until_ready(logits_bf16)
    ref = _reference_forward(r_idx, e_idx, 2, E_w, R_w, cores)
    err_bf16 = _rel_err(logits_bf16, ref)
    assert err_bf16 < 5e-2, f"bf16 mismatch vs reference (rel={err_bf16})"

    # bf16 logits emission + untrimmed (padded) output path.
    fwd_pad = make_getd_fc_forward(E_w, R_w, cores, 2,
                                   logits_dtype=jnp.bfloat16, trim_output=False)
    logits_pad, _ = fwd_pad(r_idx, e_idx)
    logits_pad = jax.block_until_ready(logits_pad)
    assert logits_pad.shape[0] % 8 == 0 and logits_pad.shape[1] % 128 == 0
    err_pad = _rel_err(logits_pad[:B, :n_ent].astype(jnp.float32), ref)
    assert err_pad < 5e-2, f"bf16-logits mismatch vs reference (rel={err_pad})"

    print("KERNEL_OK")
</pallas_src>

<mosaic_0001>
module attributes {stable_mosaic.version = 11 : i64} {
  func.func @getd_scores_kernel(%arg0: i32, %arg1: memref<8x24xf32, #tpu.memory_space<vmem>>, %arg2: memref<8x32xf32, #tpu.memory_space<vmem>>, %arg3: memref<24x32xf32, #tpu.memory_space<vmem>>, %arg4: memref<32x32xf32, #tpu.memory_space<vmem>>, %arg5: memref<32x32xf32, #tpu.memory_space<vmem>>, %arg6: memref<1x32xf32, #tpu.memory_space<vmem>>, %arg7: memref<1x32xf32, #tpu.memory_space<vmem>>, %arg8: memref<1x32xf32, #tpu.memory_space<vmem>>, %arg9: memref<32x128xf32, #tpu.memory_space<vmem>>, %arg10: memref<8x128xf32, #tpu.memory_space<vmem>>) attributes {dimension_semantics = [#tpu.dimension_semantics<parallel>], iteration_bounds = array<i64: 1>, scalar_prefetch = 0 : i64, scratch_operands = 0 : i64, tpu.core_type = #tpu.core_type<tc>, window_params = [{pipeline_mode = #tpu.pipeline_mode<synchronous>, transform_indices = @transform_0, window_bounds = array<i64: 8, 24>}, {pipeline_mode = #tpu.pipeline_mode<synchronous>, transform_indices = @transform_1, window_bounds = array<i64: 8, 32>}, {pipeline_mode = #tpu.pipeline_mode<synchronous>, transform_indices = @transform_2, window_bounds = array<i64: 24, 32>}, {pipeline_mode = #tpu.pipeline_mode<synchronous>, transform_indices = @transform_3, window_bounds = array<i64: 32, 32>}, {pipeline_mode = #tpu.pipeline_mode<synchronous>, transform_indices = @transform_4, window_bounds = array<i64: 32, 32>}, {pipeline_mode = #tpu.pipeline_mode<synchronous>, transform_indices = @transform_5, window_bounds = array<i64: 1, 32>}, {pipeline_mode = #tpu.pipeline_mode<synchronous>, transform_indices = @transform_6, window_bounds = array<i64: 1, 32>}, {pipeline_mode = #tpu.pipeline_mode<synchronous>, transform_indices = @transform_7, window_bounds = array<i64: 1, 32>}, {transform_indices = @transform_8, window_bounds = array<i64: 32, 128>}, {transform_indices = @transform_9, window_bounds = array<i64: 8, 128>}]} {
    %c0 = arith.constant 0 : index
    %c0_0 = arith.constant 0 : index
    %0 = vector.load %arg1[%c0, %c0_0] : memref<8x24xf32, #tpu.memory_space<vmem>>, vector<8x24xf32>
    %c0_1 = arith.constant 0 : index
    %c0_2 = arith.constant 0 : index
    %1 = vector.load %arg3[%c0_1, %c0_2] : memref<24x32xf32, #tpu.memory_space<vmem>>, vector<24x32xf32>
    %cst = arith.constant dense<0.000000e+00> : vector<8x32xf32>
    %2 = tpu.matmul %0, %1, %cst {dimension_numbers = #tpu.dot_dimension_numbers<[1], [0], [0], [1], [0, 0, 1, 1], [], []>} : vector<8x24xf32>, vector<24x32xf32>, vector<8x32xf32> -> vector<8x32xf32>
    %c0_3 = arith.constant 0 : index
    %c0_4 = arith.constant 0 : index
    %3 = vector.load %arg6[%c0_3, %c0_4] : memref<1x32xf32, #tpu.memory_space<vmem>>, vector<1x32xf32>
    %4 = vector.broadcast %3 : vector<1x32xf32> to vector<8x32xf32>
    %5 = arith.addf %2, %4 : vector<8x32xf32>
    %c0_5 = arith.constant 0 : index
    %c0_6 = arith.constant 0 : index
    %6 = vector.load %arg2[%c0_5, %c0_6] : memref<8x32xf32, #tpu.memory_space<vmem>>, vector<8x32xf32>
    %c0_7 = arith.constant 0 : index
    %c0_8 = arith.constant 0 : index
    %7 = vector.load %arg4[%c0_7, %c0_8] : memref<32x32xf32, #tpu.memory_space<vmem>>, vector<32x32xf32>
    %cst_9 = arith.constant dense<0.000000e+00> : vector<8x32xf32>
    %8 = tpu.matmul %6, %7, %cst_9 {dimension_numbers = #tpu.dot_dimension_numbers<[1], [0], [0], [1], [0, 0, 1, 1], [], []>} : vector<8x32xf32>, vector<32x32xf32>, vector<8x32xf32> -> vector<8x32xf32>
    %c0_10 = arith.constant 0 : index
    %c0_11 = arith.constant 0 : index
    %9 = vector.load %arg7[%c0_10, %c0_11] : memref<1x32xf32, #tpu.memory_space<vmem>>, vector<1x32xf32>
    %10 = vector.broadcast %9 : vector<1x32xf32> to vector<8x32xf32>
    %11 = arith.addf %8, %10 : vector<8x32xf32>
    %12 = arith.mulf %5, %11 : vector<8x32xf32>
    %c0_12 = arith.constant 0 : index
    %c0_13 = arith.constant 0 : index
    %13 = vector.load %arg5[%c0_12, %c0_13] : memref<32x32xf32, #tpu.memory_space<vmem>>, vector<32x32xf32>
    %cst_14 = arith.constant dense<0.000000e+00> : vector<8x32xf32>
    %14 = tpu.matmul %12, %13, %cst_14 {dimension_numbers = #tpu.dot_dimension_numbers<[1], [0], [0], [1], [0, 0, 1, 1], [], []>} : vector<8x32xf32>, vector<32x32xf32>, vector<8x32xf32> -> vector<8x32xf32>
    %c0_15 = arith.constant 0 : index
    %c0_16 = arith.constant 0 : index
    %15 = vector.load %arg8[%c0_15, %c0_16] : memref<1x32xf32, #tpu.memory_space<vmem>>, vector<1x32xf32>
    %16 = vector.broadcast %15 : vector<1x32xf32> to vector<8x32xf32>
    %17 = arith.addf %14, %16 : vector<8x32xf32>
    %c0_17 = arith.constant 0 : index
    %c0_18 = arith.constant 0 : index
    %18 = vector.load %arg9[%c0_17, %c0_18] : memref<32x128xf32, #tpu.memory_space<vmem>>, vector<32x128xf32>
    %cst_19 = arith.constant dense<0.000000e+00> : vector<8x128xf32>
    %19 = tpu.matmul %17, %18, %cst_19 {dimension_numbers = #tpu.dot_dimension_numbers<[1], [0], [0], [1], [0, 0, 1, 1], [], []>} : vector<8x32xf32>, vector<32x128xf32>, vector<8x128xf32> -> vector<8x128xf32>
    %c0_20 = arith.constant 0 : index
    %c0_21 = arith.constant 0 : index
    %20 = vector.load %arg10[%c0_20, %c0_21] : memref<8x128xf32, #tpu.memory_space<vmem>>, vector<8x128xf32>
    tpu.vector_store %arg10[%c0_20, %c0_21], %19 {strides = array<i32>} : memref<8x128xf32, #tpu.memory_space<vmem>>, vector<8x128xf32>,
    return
  }
  func.func @transform_0(%arg0: i32) -> (i32, i32) {
    %c0_i32 = arith.constant 0 : i32
    %c0_i32_0 = arith.constant 0 : i32
    %c0_i32_1 = arith.constant 0 : i32
    return %c0_i32, %c0_i32_0 : i32, i32
  }
  func.func @transform_1(%arg0: i32) -> (i32, i32) {
    %c0_i32 = arith.constant 0 : i32
    %c0_i32_0 = arith.constant 0 : i32
    %c0_i32_1 = arith.constant 0 : i32
    return %c0_i32, %c0_i32_0 : i32, i32
  }
  func.func @transform_2(%arg0: i32) -> (i32, i32) {
    %c0_i32 = arith.constant 0 : i32
    %c0_i32_0 = arith.constant 0 : i32
    %c0_i32_1 = arith.constant 0 : i32
    return %c0_i32, %c0_i32_0 : i32, i32
  }
  func.func @transform_3(%arg0: i32) -> (i32, i32) {
    %c0_i32 = arith.constant 0 : i32
    %c0_i32_0 = arith.constant 0 : i32
    %c0_i32_1 = arith.constant 0 : i32
    return %c0_i32, %c0_i32_0 : i32, i32
  }
  func.func @transform_4(%arg0: i32) -> (i32, i32) {
    %c0_i32 = arith.constant 0 : i32
    %c0_i32_0 = arith.constant 0 : i32
    %c0_i32_1 = arith.constant 0 : i32
    return %c0_i32, %c0_i32_0 : i32, i32
  }
  func.func @transform_5(%arg0: i32) -> (i32, i32) {
    %c0_i32 = arith.constant 0 : i32
    %c0_i32_0 = arith.constant 0 : i32
    %c0_i32_1 = arith.constant 0 : i32
    return %c0_i32, %c0_i32_0 : i32, i32
  }
  func.func @transform_6(%arg0: i32) -> (i32, i32) {
    %c0_i32 = arith.constant 0 : i32
    %c0_i32_0 = arith.constant 0 : i32
    %c0_i32_1 = arith.constant 0 : i32
    return %c0_i32, %c0_i32_0 : i32, i32
  }
  func.func @transform_7(%arg0: i32) -> (i32, i32) {
    %c0_i32 = arith.constant 0 : i32
    %c0_i32_0 = arith.constant 0 : i32
    %c0_i32_1 = arith.constant 0 : i32
    return %c0_i32, %c0_i32_0 : i32, i32
  }
  func.func @transform_8(%arg0: i32) -> (i32, i32) {
    %c0_i32 = arith.constant 0 : i32
    %c0_i32_0 = arith.constant 0 : i32
    return %c0_i32, %arg0 : i32, i32
  }
  func.func @transform_9(%arg0: i32) -> (i32, i32) {
    %c0_i32 = arith.constant 0 : i32
    %c0_i32_0 = arith.constant 0 : i32
    return %c0_i32, %arg0 : i32, i32
  }
}

</mosaic_0001>

<llo_original>
// kernel: tpu_custom_call.1
$region0: #{tpu_custom_call.1}
  #allocation0 [shape = 'u32[]', space=smem, size = 0x4, offset = 0x4, fixed_abs, tag = 'smem constant byte address 0x4 - core index']
  #allocation1 [shape = 'u32[144,128]{1,0:T(1,128)}', space=vmem, size = 0x12000, scoped, tag = 'internal scratch']
  %s0 = inlined_call_operand.hbm [shape: f32[8,24], index: 0, kind: input, shape index: {}]
  %s1 = inlined_call_operand.hbm [shape: f32[8,32], index: 1, kind: input, shape index: {}]
  %s2 = inlined_call_operand.hbm [shape: f32[24,32], index: 2, kind: input, shape index: {}]
  %s3 = inlined_call_operand.hbm [shape: f32[32,32], index: 3, kind: input, shape index: {}]
  %s4 = inlined_call_operand.hbm [shape: f32[32,32], index: 4, kind: input, shape index: {}]
  %s5 = inlined_call_operand.vmem [shape: f32[1,32], index: 5, kind: input, shape index: {}]
  %s6 = inlined_call_operand.vmem [shape: f32[1,32], index: 6, kind: input, shape index: {}]
  %s7 = inlined_call_operand.vmem [shape: f32[1,32], index: 7, kind: input, shape index: {}]
  %s8 = inlined_call_operand.hbm [shape: f32[32,128], index: 8, kind: input, shape index: {}]
  %s9 = inlined_call_operand.hbm [shape: f32[8,128], index: 9, kind: output, shape index: {}]
  %s10 = sld [smem:[#allocation0]]
  $region70: #{tpu_custom_call.1} parent=0
    _
  %s12 = ssub.s32 1, %s10
  %s13 = scalar_select 0, %s12, %s10
  $region1: #{tpu_custom_call.1} parent=0
    #allocation2 [shape = 'u8[4096]{0}', space=vmem, size = 0x1000, scoped, tag = 'input window, operand 0, single buffered']
    #allocation3 [shape = 's32[1]{0}', space=sflag, size = 0x4, scoped, tag = 'scoped memory for tpu_custom_call.1']
    #allocation4 [shape = 's32[1]{0}', space=sflag, size = 0x4, scoped, tag = 'scoped memory for tpu_custom_call.1']
    #allocation5 [shape = 'u8[4096]{0}', space=vmem, size = 0x1000, scoped, tag = 'input window, operand 1, single buffered']
    #allocation6 [shape = 's32[1]{0}', space=sflag, size = 0x4, scoped, tag = 'scoped memory for tpu_custom_call.1']
    #allocation7 [shape = 'u8[12288]{0}', space=vmem, size = 0x3000, scoped, tag = 'input window, operand 2, single buffered']
    #allocation8 [shape = 'u8[16384]{0}', space=vmem, size = 0x4000, scoped, tag = 'input window, operand 3, single buffered']
    #allocation9 [shape = 's32[1]{0}', space=sflag, size = 0x4, scoped, tag = 'scoped memory for tpu_custom_call.1']
    #allocation10 [shape = 'u8[16384]{0}', space=vmem, size = 0x4000, scoped, tag = 'input window, operand 4, single buffered']
    #allocation11 [shape = 'u8[16384]{0}', space=vmem, size = 0x4000, scoped, tag = 'input window, operand 8, single buffered']
    #allocation12 [shape = 's32[1]{0}', space=sflag, size = 0x4, scoped, tag = 'scoped memory for tpu_custom_call.1']
    #allocation13 [shape = 'u8[4096]{0}', space=vmem, size = 0x1000, scoped, tag = 'output window, operand 0, single buffered']
    %14 = vsyncpa [#allocation3], 0
    %15 = vsyncpa [#allocation6], 0
    %16 = vsyncpa [#allocation9], 0
    %17 = vsyncpa [#allocation12], 0
    %18 = vsyncpa [#allocation4], 0
    // Predicated region
    $region2: #{tpu_custom_call.1} parent=1 // pred_check
      _
    $region3: #{tpu_custom_call.1} parent=1 // pred_check_branch
      %20 = sbr.rel (0) target = $region5
    $region4: #{tpu_custom_call.1} parent=1 // pred_region
      %s22 = ssub.s32 128, 128
      %23 = vsyncadd [#allocation3], %s22
      %s25 = sshll.u32 [#allocation2], 4
      %s26 = int_to_ptr.vmem [resolvable:$true] %s25
      %28 = dma.hbm_to_vmem [thread:$0]  %s0, 128, %s26, [#allocation3]
    $region5: #{tpu_custom_call.1} parent=1 // pred_fallthru
      _
    // Predicated region
    $region6: #{tpu_custom_call.1} parent=1 // pred_check
      _
    $region7: #{tpu_custom_call.1} parent=1 // pred_check_branch
      %30 = sbr.rel (0) target = $region9
    $region8: #{tpu_custom_call.1} parent=1 // pred_region
      %s32 = ssub.s32 128, 128
      %33 = vsyncadd [#allocation6], %s32
      %s35 = sshll.u32 [#allocation5], 4
      %s36 = int_to_ptr.vmem [resolvable:$true] %s35
      %38 = dma.hbm_to_vmem [thread:$0]  %s1, 128, %s36, [#allocation6]
    $region9: #{tpu_custom_call.1} parent=1 // pred_fallthru
      _
    // Predicated region
    $region10: #{tpu_custom_call.1} parent=1 // pred_check
      _
    $region11: #{tpu_custom_call.1} parent=1 // pred_check_branch
      %40 = sbr.rel (0) target = $region13
    $region12: #{tpu_custom_call.1} parent=1 // pred_region
      %s42 = ssub.s32 384, 384
      %43 = vsyncadd [#allocation6], %s42
      %s44 = sshll.u32 [#allocation7], 4
      %s45 = int_to_ptr.vmem [resolvable:$true] %s44
      %50 = dma.hbm_to_vmem [thread:$0]  %s2, 384, %s45, [#allocation6], 128, 128, 8
    $region13: #{tpu_custom_call.1} parent=1 // pred_fallthru
      _
    // Predicated region
    $region14: #{tpu_custom_call.1} parent=1 // pred_check
      _
    $region15: #{tpu_custom_call.1} parent=1 // pred_check_branch
      %52 = sbr.rel (0) target = $region17
    $region16: #{tpu_custom_call.1} parent=1 // pred_region
      %s54 = ssub.s32 512, 512
      %55 = vsyncadd [#allocation9], %s54
      %s56 = sshll.u32 [#allocation8], 4
      %s57 = int_to_ptr.vmem [resolvable:$true] %s56
      %62 = dma.hbm_to_vmem [thread:$0]  %s3, 512, %s57, [#allocation9], 128, 128, 8
    $region17: #{tpu_custom_call.1} parent=1 // pred_fallthru
      _
    // Predicated region
    $region18: #{tpu_custom_call.1} parent=1 // pred_check
      _
    $region19: #{tpu_custom_call.1} parent=1 // pred_check_branch
      %64 = sbr.rel (0) target = $region21
    $region20: #{tpu_custom_call.1} parent=1 // pred_region
      %s66 = ssub.s32 512, 512
      %67 = vsyncadd [#allocation9], %s66
      %s68 = sshll.u32 [#allocation10], 4
      %s69 = int_to_ptr.vmem [resolvable:$true] %s68
      %74 = dma.hbm_to_vmem [thread:$0]  %s4, 512, %s69, [#allocation9], 128, 128, 8
    $region21: #{tpu_custom_call.1} parent=1 // pred_fallthru
      _
    // Predicated region
    $region22: #{tpu_custom_call.1} parent=1 // pred_check
      _
    $region23: #{tpu_custom_call.1} parent=1 // pred_check_branch
      %76 = sbr.rel (0) target = $region25
    $region24: #{tpu_custom_call.1} parent=1 // pred_region
      _
    $region25: #{tpu_custom_call.1} parent=1 // pred_fallthru
      _
    // Predicated region
    $region26: #{tpu_custom_call.1} parent=1 // pred_check
      _
    $region27: #{tpu_custom_call.1} parent=1 // pred_check_branch
      %78 = sbr.rel (0) target = $region29
    $region28: #{tpu_custom_call.1} parent=1 // pred_region
      _
    $region29: #{tpu_custom_call.1} parent=1 // pred_fallthru
      _
    // Predicated region
    $region30: #{tpu_custom_call.1} parent=1 // pred_check
      _
    $region31: #{tpu_custom_call.1} parent=1 // pred_check_branch
      %80 = sbr.rel (0) target = $region33
    $region32: #{tpu_custom_call.1} parent=1 // pred_region
      _
    $region33: #{tpu_custom_call.1} parent=1 // pred_fallthru
      _
    // Predicated region
    $region34: #{tpu_custom_call.1} parent=1 // pred_check
      _
    $region35: #{tpu_custom_call.1} parent=1 // pred_check_branch
      %82 = sbr.rel (0) target = $region37
    $region36: #{tpu_custom_call.1} parent=1 // pred_region
      %s84 = ssub.s32 512, 512
      %85 = vsyncadd [#allocation12], %s84
      %s86 = sshll.u32 [#allocation11], 4
      %s87 = int_to_ptr.vmem [resolvable:$true] %s86
      %92 = dma.hbm_to_vmem [thread:$0]  %s8, 512, %s87, [#allocation12], 128, 128, 8
    $region37: #{tpu_custom_call.1} parent=1 // pred_fallthru
      _
    // Predicated region
    $region38: #{tpu_custom_call.1} parent=1 // pred_check
      _
    $region39: #{tpu_custom_call.1} parent=1 // pred_check_branch
      %94 = sbr.rel (0) target = $region41
    $region40: #{tpu_custom_call.1} parent=1 // pred_region
      %95 = dma.done [#allocation3], 128
    $region41: #{tpu_custom_call.1} parent=1 // pred_fallthru
      _
    // Predicated region
    $region42: #{tpu_custom_call.1} parent=1 // pred_check
      _
    $region43: #{tpu_custom_call.1} parent=1 // pred_check_branch
      %97 = sbr.rel (0) target = $region45
    $region44: #{tpu_custom_call.1} parent=1 // pred_region
      %98 = dma.done [#allocation6], 128
    $region45: #{tpu_custom_call.1} parent=1 // pred_fallthru
      _
    // Predicated region
    $region46: #{tpu_custom_call.1} parent=1 // pred_check
      _
    $region47: #{tpu_custom_call.1} parent=1 // pred_check_branch
      %100 = sbr.rel (0) target = $region49
    $region48: #{tpu_custom_call.1} parent=1 // pred_region
      %101 = dma.done [#allocation6], 384
    $region49: #{tpu_custom_call.1} parent=1 // pred_fallthru
      _
    // Predicated region
    $region50: #{tpu_custom_call.1} parent=1 // pred_check
      _
    $region51: #{tpu_custom_call.1} parent=1 // pred_check_branch
      %103 = sbr.rel (0) target = $region53
    $region52: #{tpu_custom_call.1} parent=1 // pred_region
      %104 = dma.done [#allocation9], 512
    $region53: #{tpu_custom_call.1} parent=1 // pred_fallthru
      _
    // Predicated region
    $region54: #{tpu_custom_call.1} parent=1 // pred_check
      _
    $region55: #{tpu_custom_call.1} parent=1 // pred_check_branch
      %106 = sbr.rel (0) target = $region57
    $region56: #{tpu_custom_call.1} parent=1 // pred_region
      %107 = dma.done [#allocation9], 512
    $region57: #{tpu_custom_call.1} parent=1 // pred_fallthru
      _
    // Predicated region
    $region58: #{tpu_custom_call.1} parent=1 // pred_check
      _
    $region59: #{tpu_custom_call.1} parent=1 // pred_check_branch
      %109 = sbr.rel (0) target = $region61
    $region60: #{tpu_custom_call.1} parent=1 // pred_region
      %110 = dma.done [#allocation12], 512
    $region61: #{tpu_custom_call.1} parent=1 // pred_fallthru
      _
    %v111 = vld [vmem:[#allocation2] sm:$0xff]
    %v112 = vld [vmem:[#allocation7] sm:$0xff]
    %v113 = vld [vmem:[#allocation7 + $0x8] sm:$0xff]
    %v114 = vld [vmem:[#allocation7 + $0x10] sm:$0xff]
    %v115 = vld [vmem:[%s5] sm:$0x1]
    %v117 = vlaneseq
    %v118 = vshrl.u32 %v117, 7
    %v119 = vsub.s32 0, %v118
    %v120 = vrot.slane %v115, %v119
    %vm122 = vcmask 195584
    %v124 = vsel %vm122, %v111, 0
    %126 = vmatprep.subr.mxu0 0.0
    %127 = vmatpush1.msra.mxu0 %v112
    %128 = vmatprep.subr.mxu0 0.0
    %129 = vmatpush1.msra.mxu0 %v113
    %130 = vmatprep.subr.mxu0 0.0
    %131 = vmatpush1.msra.mxu0 %v114
    %132 = vmatprep.subr.mxu0 0.0
    %133 = vmatpush1.msra.mxu0 0.0
    %134 = vmatprep.subr.mxu0 0.0
    %135 = vmatpush1.msra.mxu0 0.0
    %136 = vmatprep.subr.mxu0 0.0
    %137 = vmatpush1.msra.mxu0 0.0
    %138 = vmatprep.subr.mxu0 0.0
    %139 = vmatpush1.msra.mxu0 0.0
    %140 = vmatprep.subr.mxu0 0.0
    %141 = vmatpush1.msra.mxu0 0.0
    %142 = vmatprep.subr.mxu0 0.0
    %143 = vmatpush1.msra.mxu0 0.0
    %144 = vmatprep.subr.mxu0 0.0
    %145 = vmatpush1.msra.mxu0 0.0
    %146 = vmatprep.subr.mxu0 0.0
    %147 = vmatpush1.msra.mxu0 0.0
    %148 = vmatprep.subr.mxu0 0.0
    %149 = vmatpush1.msra.mxu0 0.0
    %150 = vmatprep.subr.mxu0 0.0
    %151 = vmatpush1.msra.mxu0 0.0
    %152 = vmatprep.subr.mxu0 0.0
    %153 = vmatpush1.msra.mxu0 0.0
    %154 = vmatprep.subr.mxu0 0.0
    %155 = vmatpush1.msra.mxu0 0.0
    %156 = vmatprep.subr.mxu0 0.0
    %157 = vmatpush1.msra.mxu0 0.0
    %158 = vmatprep.subr.mxu0 0.0
    %159 = vmatpush1.msra.mxu0 0.0
    %160 = vmatprep.subr.mxu0 0.0
    %161 = vmatpush1.msra.mxu0 0.0
    %162 = vmatprep.subr.mxu0 0.0
    %163 = vmatpush1.msra.mxu0 0.0
    %164 = vmatprep.subr.mxu0 0.0
    %165 = vmatpush1.msra.mxu0 0.0
    %166 = vmatprep.subr.mxu0 0.0
    %167 = vmatpush1.msra.mxu0 0.0
    %168 = vmatprep.subr.mxu0 0.0
    %169 = vmatpush1.msra.mxu0 0.0
    %170 = vmatprep.subr.mxu0 0.0
    %171 = vmatpush1.msra.mxu0 0.0
    %172 = vmatprep.subr.mxu0 0.0
    %173 = vmatpush1.msra.mxu0 0.0
    %174 = vmatprep.subr.mxu0 0.0
    %175 = vmatpush1.msra.mxu0 0.0
    %176 = vmatprep.subr.mxu0 0.0
    %177 = vmatpush1.msra.mxu0 0.0
    %178 = vmatprep.subr.mxu0 0.0
    %179 = vmatpush1.msra.mxu0 0.0
    %180 = vmatprep.subr.mxu0 0.0
    %181 = vmatpush1.msra.mxu0 0.0
    %182 = vmatprep.subr.mxu0 0.0
    %183 = vmatpush1.msra.mxu0 0.0
    %184 = vmatprep.subr.mxu0 0.0
    %185 = vmatpush1.msra.mxu0 0.0
    %186 = vmatprep.subr.mxu0 0.0
    %187 = vmatpush1.msra.mxu0 0.0
    %188 = vmatprep.subr.mxu0 0.0
    %189 = vmatpush1.msra.mxu0 0.0
    %190 = vmatprep.mubr.f32.mxu0 0.0
    %191 = vmatmul.mubr.f32.gmra.mrb[0].mxu0 %v124
    %v192 = vpop.f32.mrb[0].mxu0
    %v193 = vadd.f32 %v120, %v192
    %v194 = vpop.f32.mrb[0].mxu0
    %195 = vdwg.mxu0
    %v196 = vld [vmem:[#allocation5] sm:$0xff]
    %v197 = vld [vmem:[#allocation8] sm:$0xff]
    %v198 = vld [vmem:[#allocation8 + $0x8] sm:$0xff]
    %v199 = vld [vmem:[#allocation8 + $0x10] sm:$0xff]
    %v200 = vld [vmem:[#allocation8 + $0x18] sm:$0xff]
    %v201 = vld [vmem:[%s6] sm:$0x1]
    %v203 = vlaneseq
    %v204 = vshrl.u32 %v203, 7
    %v205 = vsub.s32 0, %v204
    %v206 = vrot.slane %v201, %v205
    %vm208 = vcmask 261120
    %v210 = vsel %vm208, %v196, 0
    %212 = vmatprep.subr.mxu0 0.0
    %213 = vmatpush1.msra.mxu0 %v197
    %214 = vmatprep.subr.mxu0 0.0
    %215 = vmatpush1.msra.mxu0 %v198
    %216 = vmatprep.subr.mxu0 0.0
    %217 = vmatpush1.msra.mxu0 %v199
    %218 = vmatprep.subr.mxu0 0.0
    %219 = vmatpush1.msra.mxu0 %v200
    %220 = vmatprep.subr.mxu0 0.0
    %221 = vmatpush1.msra.mxu0 0.0
    %222 = vmatprep.subr.mxu0 0.0
    %223 = vmatpush1.msra.mxu0 0.0
    %224 = vmatprep.subr.mxu0 0.0
    %225 = vmatpush1.msra.mxu0 0.0
    %226 = vmatprep.subr.mxu0 0.0
    %227 = vmatpush1.msra.mxu0 0.0
    %228 = vmatprep.subr.mxu0 0.0
    %229 = vmatpush1.msra.mxu0 0.0
    %230 = vmatprep.subr.mxu0 0.0
    %231 = vmatpush1.msra.mxu0 0.0
    %232 = vmatprep.subr.mxu0 0.0
    %233 = vmatpush1.msra.mxu0 0.0
    %234 = vmatprep.subr.mxu0 0.0
    %235 = vmatpush1.msra.mxu0 0.0
    %236 = vmatprep.subr.mxu0 0.0
    %237 = vmatpush1.msra.mxu0 0.0
    %238 = vmatprep.subr.mxu0 0.0
    %239 = vmatpush1.msra.mxu0 0.0
    %240 = vmatprep.subr.mxu0 0.0
    %241 = vmatpush1.msra.mxu0 0.0
    %242 = vmatprep.subr.mxu0 0.0
    %243 = vmatpush1.msra.mxu0 0.0
    %244 = vmatprep.subr.mxu0 0.0
    %245 = vmatpush1.msra.mxu0 0.0
    %246 = vmatprep.subr.mxu0 0.0
    %247 = vmatpush1.msra.mxu0 0.0
    %248 = vmatprep.subr.mxu0 0.0
    %249 = vmatpush1.msra.mxu0 0.0
    %250 = vmatprep.subr.mxu0 0.0
    %251 = vmatpush1.msra.mxu0 0.0
    %252 = vmatprep.subr.mxu0 0.0
    %253 = vmatpush1.msra.mxu0 0.0
    %254 = vmatprep.subr.mxu0 0.0
    %255 = vmatpush1.msra.mxu0 0.0
    %256 = vmatprep.subr.mxu0 0.0
    %257 = vmatpush1.msra.mxu0 0.0
    %258 = vmatprep.subr.mxu0 0.0
    %259 = vmatpush1.msra.mxu0 0.0
    %260 = vmatprep.subr.mxu0 0.0
    %261 = vmatpush1.msra.mxu0 0.0
    %262 = vmatprep.subr.mxu0 0.0
    %263 = vmatpush1.msra.mxu0 0.0
    %264 = vmatprep.subr.mxu0 0.0
    %265 = vmatpush1.msra.mxu0 0.0
    %266 = vmatprep.subr.mxu0 0.0
    %267 = vmatpush1.msra.mxu0 0.0
    %268 = vmatprep.subr.mxu0 0.0
    %269 = vmatpush1.msra.mxu0 0.0
    %270 = vmatprep.subr.mxu0 0.0
    %271 = vmatpush1.msra.mxu0 0.0
    %272 = vmatprep.subr.mxu0 0.0
    %273 = vmatpush1.msra.mxu0 0.0
    %274 = vmatprep.subr.mxu0 0.0
    %275 = vmatpush1.msra.mxu0 0.0
    %276 = vmatprep.mubr.f32.mxu0 0.0
    %277 = vmatmul.mubr.f32.gmra.mrb[0].mxu0 %v210
    %v278 = vpop.f32.mrb[0].mxu0
    %v279 = vadd.f32 %v206, %v278
    %v280 = vpop.f32.mrb[0].mxu0
    %281 = vdwg.mxu0
    %v282 = vmul.f32 %v193, %v279
    %v283 = vld [vmem:[#allocation10] sm:$0xff]
    %v284 = vld [vmem:[#allocation10 + $0x8] sm:$0xff]
    %v285 = vld [vmem:[#allocation10 + $0x10] sm:$0xff]
    %v286 = vld [vmem:[#allocation10 + $0x18] sm:$0xff]
    %v287 = vld [vmem:[%s7] sm:$0x1]
    %v289 = vlaneseq
    %v290 = vshrl.u32 %v289, 7
    %v291 = vsub.s32 0, %v290
    %v292 = vrot.slane %v287, %v291
    %v295 = vsel %vm208, %v282, 0
    %297 = vmatprep.subr.mxu0 0.0
    %298 = vmatpush1.msra.mxu0 %v283
    %299 = vmatprep.subr.mxu0 0.0
    %300 = vmatpush1.msra.mxu0 %v284
    %301 = vmatprep.subr.mxu0 0.0
    %302 = vmatpush1.msra.mxu0 %v285
    %303 = vmatprep.subr.mxu0 0.0
    %304 = vmatpush1.msra.mxu0 %v286
    %305 = vmatprep.subr.mxu0 0.0
    %306 = vmatpush1.msra.mxu0 0.0
    %307 = vmatprep.subr.mxu0 0.0
    %308 = vmatpush1.msra.mxu0 0.0
    %309 = vmatprep.subr.mxu0 0.0
    %310 = vmatpush1.msra.mxu0 0.0
    %311 = vmatprep.subr.mxu0 0.0
    %312 = vmatpush1.msra.mxu0 0.0
    %313 = vmatprep.subr.mxu0 0.0
    %314 = vmatpush1.msra.mxu0 0.0
    %315 = vmatprep.subr.mxu0 0.0
    %316 = vmatpush1.msra.mxu0 0.0
    %317 = vmatprep.subr.mxu0 0.0
    %318 = vmatpush1.msra.mxu0 0.0
    %319 = vmatprep.subr.mxu0 0.0
    %320 = vmatpush1.msra.mxu0 0.0
    %321 = vmatprep.subr.mxu0 0.0
    %322 = vmatpush1.msra.mxu0 0.0
    %323 = vmatprep.subr.mxu0 0.0
    %324 = vmatpush1.msra.mxu0 0.0
    %325 = vmatprep.subr.mxu0 0.0
    %326 = vmatpush1.msra.mxu0 0.0
    %327 = vmatprep.subr.mxu0 0.0
    %328 = vmatpush1.msra.mxu0 0.0
    %329 = vmatprep.subr.mxu0 0.0
    %330 = vmatpush1.msra.mxu0 0.0
    %331 = vmatprep.subr.mxu0 0.0
    %332 = vmatpush1.msra.mxu0 0.0
    %333 = vmatprep.subr.mxu0 0.0
    %334 = vmatpush1.msra.mxu0 0.0
    %335 = vmatprep.subr.mxu0 0.0
    %336 = vmatpush1.msra.mxu0 0.0
    %337 = vmatprep.subr.mxu0 0.0
    %338 = vmatpush1.msra.mxu0 0.0
    %339 = vmatprep.subr.mxu0 0.0
    %340 = vmatpush1.msra.mxu0 0.0
    %341 = vmatprep.subr.mxu0 0.0
    %342 = vmatpush1.msra.mxu0 0.0
    %343 = vmatprep.subr.mxu0 0.0
    %344 = vmatpush1.msra.mxu0 0.0
    %345 = vmatprep.subr.mxu0 0.0
    %346 = vmatpush1.msra.mxu0 0.0
    %347 = vmatprep.subr.mxu0 0.0
    %348 = vmatpush1.msra.mxu0 0.0
    %349 = vmatprep.subr.mxu0 0.0
    %350 = vmatpush1.msra.mxu0 0.0
    %351 = vmatprep.subr.mxu0 0.0
    %352 = vmatpush1.msra.mxu0 0.0
    %353 = vmatprep.subr.mxu0 0.0
    %354 = vmatpush1.msra.mxu0 0.0
    %355 = vmatprep.subr.mxu0 0.0
    %356 = vmatpush1.msra.mxu0 0.0
    %357 = vmatprep.subr.mxu0 0.0
    %358 = vmatpush1.msra.mxu0 0.0
    %359 = vmatprep.subr.mxu0 0.0
    %360 = vmatpush1.msra.mxu0 0.0
    %361 = vmatprep.mubr.f32.mxu0 0.0
    %362 = vmatmul.mubr.f32.gmra.mrb[0].mxu0 %v295
    %v363 = vpop.f32.mrb[0].mxu0
    %v364 = vadd.f32 %v292, %v363
    %v365 = vpop.f32.mrb[0].mxu0
    %366 = vdwg.mxu0
    %v367 = vld [vmem:[#allocation11] sm:$0xff]
    %v368 = vld [vmem:[#allocation11 + $0x8] sm:$0xff]
    %v369 = vld [vmem:[#allocation11 + $0x10] sm:$0xff]
    %v370 = vld [vmem:[#allocation11 + $0x18] sm:$0xff]
    %v372 = vsel %vm208, %v364, 0
    %374 = vmatprep.subr.mxu0 0.0
    %375 = vmatpush1.msra.mxu0 %v367
    %376 = vmatprep.subr.mxu0 0.0
    %377 = vmatpush1.msra.mxu0 %v368
    %378 = vmatprep.subr.mxu0 0.0
    %379 = vmatpush1.msra.mxu0 %v369
    %380 = vmatprep.subr.mxu0 0.0
    %381 = vmatpush1.msra.mxu0 %v370
    %382 = vmatprep.subr.mxu0 0.0
    %383 = vmatpush1.msra.mxu0 0.0
    %384 = vmatprep.subr.mxu0 0.0
    %385 = vmatpush1.msra.mxu0 0.0
    %386 = vmatprep.subr.mxu0 0.0
    %387 = vmatpush1.msra.mxu0 0.0
    %388 = vmatprep.subr.mxu0 0.0
    %389 = vmatpush1.msra.mxu0 0.0
    %390 = vmatprep.subr.mxu0 0.0
    %391 = vmatpush1.msra.mxu0 0.0
    %392 = vmatprep.subr.mxu0 0.0
    %393 = vmatpush1.msra.mxu0 0.0
    %394 = vmatprep.subr.mxu0 0.0
    %395 = vmatpush1.msra.mxu0 0.0
    %396 = vmatprep.subr.mxu0 0.0
    %397 = vmatpush1.msra.mxu0 0.0
    %398 = vmatprep.subr.mxu0 0.0
    %399 = vmatpush1.msra.mxu0 0.0
    %400 = vmatprep.subr.mxu0 0.0
    %401 = vmatpush1.msra.mxu0 0.0
    %402 = vmatprep.subr.mxu0 0.0
    %403 = vmatpush1.msra.mxu0 0.0
    %404 = vmatprep.subr.mxu0 0.0
    %405 = vmatpush1.msra.mxu0 0.0
    %406 = vmatprep.subr.mxu0 0.0
    %407 = vmatpush1.msra.mxu0 0.0
    %408 = vmatprep.subr.mxu0 0.0
    %409 = vmatpush1.msra.mxu0 0.0
    %410 = vmatprep.subr.mxu0 0.0
    %411 = vmatpush1.msra.mxu0 0.0
    %412 = vmatprep.subr.mxu0 0.0
    %413 = vmatpush1.msra.mxu0 0.0
    %414 = vmatprep.subr.mxu0 0.0
    %415 = vmatpush1.msra.mxu0 0.0
    %416 = vmatprep.subr.mxu0 0.0
    %417 = vmatpush1.msra.mxu0 0.0
    %418 = vmatprep.subr.mxu0 0.0
    %419 = vmatpush1.msra.mxu0 0.0
    %420 = vmatprep.subr.mxu0 0.0
    %421 = vmatpush1.msra.mxu0 0.0
    %422 = vmatprep.subr.mxu0 0.0
    %423 = vmatpush1.msra.mxu0 0.0
    %424 = vmatprep.subr.mxu0 0.0
    %425 = vmatpush1.msra.mxu0 0.0
    %426 = vmatprep.subr.mxu0 0.0
    %427 = vmatpush1.msra.mxu0 0.0
    %428 = vmatprep.subr.mxu0 0.0
    %429 = vmatpush1.msra.mxu0 0.0
    %430 = vmatprep.subr.mxu0 0.0
    %431 = vmatpush1.msra.mxu0 0.0
    %432 = vmatprep.subr.mxu0 0.0
    %433 = vmatpush1.msra.mxu0 0.0
    %434 = vmatprep.subr.mxu0 0.0
    %435 = vmatpush1.msra.mxu0 0.0
    %436 = vmatprep.subr.mxu0 0.0
    %437 = vmatpush1.msra.mxu0 0.0
    %438 = vmatprep.mubr.f32.mxu0 0.0
    %439 = vmatmul.mubr.f32.gmra.mrb[0].mxu0 %v372
    %v440 = vpop.f32.mrb[0].mxu0
    %v441 = vadd.f32 0.0, %v440
    %v442 = vpop.f32.mrb[0].mxu0
    %443 = vdwg.mxu0
    %444 = vst [vmem:[#allocation13] sm:$0xff] %v441
    // Predicated region
    $region62: #{tpu_custom_call.1} parent=1 // pred_check
      _
    $region63: #{tpu_custom_call.1} parent=1 // pred_check_branch
      %446 = sbr.rel (0) target = $region65
    $region64: #{tpu_custom_call.1} parent=1 // pred_region
      %s448 = ssub.s32 128, 128
      %449 = vsyncadd [#allocation4], %s448
      %s451 = sshll.u32 [#allocation13], 4
      %s452 = int_to_ptr.vmem [resolvable:$true] %s451
      %454 = dma.vmem_to_hbm [thread:$0]  %s452, 128, %s9, [#allocation4]
    $region65: #{tpu_custom_call.1} parent=1 // pred_fallthru
      _
    // Predicated region
    $region66: #{tpu_custom_call.1} parent=1 // pred_check
      _
    $region67: #{tpu_custom_call.1} parent=1 // pred_check_branch
      %456 = sbr.rel (0) target = $region69
    $region68: #{tpu_custom_call.1} parent=1 // pred_region
      %457 = dma.done [#allocation4], 128
    $region69: #{tpu_custom_call.1} parent=1 // pred_fallthru
      _
    %458 = vsyncpa [#allocation3], 1
    %459 = vsyncpa [#allocation6], 1
    %460 = vsyncpa [#allocation9], 1
    %461 = vsyncpa [#allocation12], 1
    %462 = vsyncpa [#allocation4], 1

</llo_original>
